<compile_context>
chip_gen: v6e
topology: v6e:2x2x1
jax: 0.10.0
libtpu: 0.0.40
codegen_flags: <defaults>
</compile_context>

<pallas_src>
import functools

import jax
import jax.numpy as jnp
from jax.experimental import pallas as pl
from jax.experimental.pallas import tpu as pltpu

LANES = 128
MIN_ROWS = 8                 # sublane granularity
MAX_BLOCK_ROWS = 4096        # 4096 * 128 * 4B = 2 MiB per f32 input tile


def _cdiv(a, b):
    return -(-a // b)


def _round_up(a, b):
    return _cdiv(a, b) * b


def _binary_kl_kernel(x_ref, t_ref, out_ref, *, temp: float, lamb: float, ignore_index: float):
    x = x_ref[...].astype(jnp.float32)
    t = t_ref[...].astype(jnp.float32)

    # Collapsed sigmoid -> log -> log_softmax for the 2-class case:
    #   li0 = -softplus(u), li1 = -softplus(-u) = u - softplus(u),  with u = x / temp^2.
    inv_t2 = 1.0 / (temp * temp)
    u = x * inv_t2
    sp = jnp.maximum(u, 0.0) + jnp.log(1.0 + jnp.exp(-jnp.abs(u)))   # stable softplus(u)

    # Two-class smoothed target; rows whose class-0 target equals ignore_index are dropped.
    # Host-side padding uses the sentinel t = 1 - ignore_index, so it is masked here too.
    t0 = 1.0 - t
    valid = t0 != ignore_index
    s0 = (1.0 - lamb) * t0 + 0.5 * lamb
    s1 = (1.0 - lamb) * t + 0.5 * lamb

    # Folded KL (uses s0 + s1 == 1):
    #   kl = s0*(log s0 - li0) + s1*(log s1 - li1) = softplus(u) - s1*u + s0*log s0 + s1*log s1
    # For s == 0 (only possible when lamb == 0) s * log(max(s, tiny)) == 0, matching torch
    # kl_div's zeroing of non-positive targets; negative s only occurs on ignored/padded rows,
    # which are masked below, and the clamp keeps them NaN-free.
    tiny = jnp.float32(1e-30)
    ent = s0 * jnp.log(jnp.maximum(s0, tiny)) + s1 * jnp.log(jnp.maximum(s1, tiny))
    kl = sp - s1 * u + ent

    vals = jnp.where(valid, kl, 0.0)
    cnts = valid.astype(jnp.float32)

    # Per-lane partial sums (sublane-only reduce) -> single lane-dense (1, 2, 128) store.
    part = jnp.concatenate(
        [jnp.sum(vals, axis=0, keepdims=True),
         jnp.sum(cnts, axis=0, keepdims=True)],
        axis=0,
    )
    out_ref[...] = part.reshape(out_ref.shape)


def binary_kl_distillation_loss(inputs, targets, temp: float = 1.0,
                                lamb: float = 1e-4, ignore_index: float = -1.0):
    assert inputs.ndim == 1 and targets.ndim == 1
    assert inputs.shape[0] == targets.shape[0]
    n = inputs.shape[0]

    # --- tiling: big blocks amortize the ~0.35 us/step overhead; >= 2 blocks so both v7x TCs
    #     get work; even block count for large inputs keeps the two TCs balanced.
    rows_min = _round_up(_cdiv(n, LANES), MIN_ROWS)
    num_blocks = _cdiv(rows_min, MAX_BLOCK_ROWS)
    if num_blocks == 1 and rows_min >= 2 * MIN_ROWS:
        num_blocks = 2
    elif num_blocks > 2 and num_blocks % 2 == 1:
        num_blocks += 1
    block_rows = _round_up(_cdiv(rows_min, num_blocks), MIN_ROWS)
    rows = num_blocks * block_rows
    total = rows * LANES

    # --- padding to a full block multiple; targets get the self-ignoring sentinel so the
    #     kernel needs no per-element index masking at all.
    sentinel = 1.0 - float(ignore_index)
    pad = total - n
    if pad:
        inputs = jnp.pad(inputs, (0, pad))
        targets = jnp.pad(targets, (0, pad), constant_values=sentinel)

    x2d = inputs.reshape(rows, LANES)
    t2d = targets.reshape(rows, LANES)

    kernel = functools.partial(_binary_kl_kernel, temp=float(temp), lamb=float(lamb),
                               ignore_index=float(ignore_index))

    # Double-buffered input tiles + small headroom; explicit so v5e's 16 MiB scoped default
    # never silently limits us, capped well under v7x's 64 MiB physical VMEM.
    tile_bytes = block_rows * LANES * (x2d.dtype.itemsize + t2d.dtype.itemsize)
    vmem_bytes = int(min(max(2 * tile_bytes + (4 << 20), 16 << 20), 48 << 20))

    parts = pl.pallas_call(
        kernel,
        out_shape=jax.ShapeDtypeStruct((num_blocks, 2, LANES), jnp.float32),
        grid_spec=pltpu.PrefetchScalarGridSpec(
            num_scalar_prefetch=0,
            grid=(num_blocks,),
            in_specs=[
                pl.BlockSpec((block_rows, LANES), lambda i: (i, 0)),
                pl.BlockSpec((block_rows, LANES), lambda i: (i, 0)),
            ],
            out_specs=pl.BlockSpec((1, 2, LANES), lambda i: (i, 0, 0)),
        ),
        compiler_params=pltpu.CompilerParams(
            dimension_semantics=("parallel",),
            vmem_limit_bytes=vmem_bytes,
        ),
    )(x2d, t2d)

    # Tiny O(num_blocks * 128) epilogue. NaN if every row is ignored (matches torch .mean() of
    # an empty selection).
    return jnp.sum(parts[:, 0, :]) / jnp.sum(parts[:, 1, :])


def _reference(inputs, targets, temp=1.0, lamb=1e-4, ignore_index=-1.0):
    """Pure-JAX reference mirroring the PyTorch module (intended semantics)."""
    p = jax.nn.sigmoid(inputs / temp)[:, None]
    li = jnp.log(jnp.concatenate([1.0 - p, p], axis=1))
    li = jax.nn.log_softmax(li / temp, axis=-1)
    t = targets[:, None]
    T = jnp.concatenate([1.0 - t, t], axis=-1)
    valid = T[:, 0] != ignore_index
    Ts = (1.0 - lamb) * T + lamb / 2.0
    kl = jnp.where(Ts > 0, Ts * (jnp.log(jnp.where(Ts > 0, Ts, 1.0)) - li), 0.0)
    row = kl.sum(-1)
    return jnp.sum(jnp.where(valid, row, 0.0)) / jnp.sum(valid.astype(jnp.float32))


if __name__ == "__main__":
    key = jax.random.PRNGKey(0)

    # Test 1: small, single block.
    k1, k2, k3, k4 = jax.random.split(key, 4)
    n1 = 200
    x1 = jax.random.normal(k1, (n1,), dtype=jnp.float32)          # binary logits
    t1 = jax.random.uniform(k2, (n1,), dtype=jnp.float32)         # ensemble marginals
    t1 = t1.at[5].set(2.0).at[37].set(2.0)                        # rows the parent mask drops
    loss1 = binary_kl_distillation_loss(x1, t1, temp=1.0)
    jax.block_until_ready(loss1)
    ref1 = _reference(x1, t1, temp=1.0)
    assert jnp.isfinite(loss1), loss1
    assert jnp.allclose(loss1, ref1, rtol=1e-5, atol=1e-5), (loss1, ref1)

    # Test 2: multi-block grid (exercises the parallel grid + per-block partials), temp != 1.
    n2 = 3000
    x2 = jax.random.normal(k3, (n2,), dtype=jnp.float32)
    t2 = jax.random.uniform(k4, (n2,), dtype=jnp.float32)
    t2 = t2.at[0].set(2.0).at[1234].set(2.0).at[2999].set(2.0)
    loss2 = binary_kl_distillation_loss(x2, t2, temp=2.0)
    jax.block_until_ready(loss2)
    ref2 = _reference(x2, t2, temp=2.0)
    assert jnp.isfinite(loss2), loss2
    assert jnp.allclose(loss2, ref2, rtol=1e-5, atol=1e-5), (loss2, ref2)

    print("KERNEL_OK")
</pallas_src>

<mosaic_0001>
module attributes {stable_mosaic.version = 11 : i64} {
  func.func @_binary_kl_kernel(%arg0: i32, %arg1: memref<8x128xf32, #tpu.memory_space<vmem>>, %arg2: memref<8x128xf32, #tpu.memory_space<vmem>>, %arg3: memref<1x2x128xf32, #tpu.memory_space<vmem>>) attributes {dimension_semantics = [#tpu.dimension_semantics<parallel>], iteration_bounds = array<i64: 1>, scalar_prefetch = 0 : i64, scratch_operands = 0 : i64, tpu.core_type = #tpu.core_type<tc>, window_params = [{transform_indices = @transform_0, window_bounds = array<i64: 8, 128>}, {transform_indices = @transform_1, window_bounds = array<i64: 8, 128>}, {transform_indices = @transform_2, window_bounds = array<i64: 1, 2, 128>}]} {
    %c0 = arith.constant 0 : index
    %c0_0 = arith.constant 0 : index
    %0 = vector.load %arg1[%c0, %c0_0] : memref<8x128xf32, #tpu.memory_space<vmem>>, vector<8x128xf32>
    %c0_1 = arith.constant 0 : index
    %c0_2 = arith.constant 0 : index
    %1 = vector.load %arg2[%c0_1, %c0_2] : memref<8x128xf32, #tpu.memory_space<vmem>>, vector<8x128xf32>
    %cst = arith.constant 1.000000e+00 : f32
    %2 = vector.broadcast %cst : f32 to vector<8x128xf32>
    %3 = arith.mulf %0, %2 : vector<8x128xf32>
    %cst_3 = arith.constant 0.000000e+00 : f32
    %4 = vector.broadcast %cst_3 : f32 to vector<8x128xf32>
    %5 = arith.maximumf %3, %4 : vector<8x128xf32>
    %6 = math.absf %3 : vector<8x128xf32>
    %cst_4 = arith.constant 0.000000e+00 : f32
    %7 = vector.broadcast %cst_4 : f32 to vector<8x128xf32>
    %8 = arith.subf %7, %6 : vector<8x128xf32>
    %9 = math.exp %8 : vector<8x128xf32>
    %cst_5 = arith.constant 1.000000e+00 : f32
    %10 = vector.broadcast %cst_5 : f32 to vector<8x128xf32>
    %11 = arith.addf %10, %9 : vector<8x128xf32>
    %12 = math.log %11 : vector<8x128xf32>
    %13 = arith.addf %5, %12 : vector<8x128xf32>
    %cst_6 = arith.constant 1.000000e+00 : f32
    %14 = vector.broadcast %cst_6 : f32 to vector<8x128xf32>
    %15 = arith.subf %14, %1 : vector<8x128xf32>
    %cst_7 = arith.constant -1.000000e+00 : f32
    %16 = vector.broadcast %cst_7 : f32 to vector<8x128xf32>
    %17 = arith.cmpf one, %15, %16 : vector<8x128xf32>
    %cst_8 = arith.constant 0.999899983 : f32
    %18 = vector.broadcast %cst_8 : f32 to vector<8x128xf32>
    %19 = arith.mulf %18, %15 : vector<8x128xf32>
    %cst_9 = arith.constant 5.000000e-05 : f32
    %20 = vector.broadcast %cst_9 : f32 to vector<8x128xf32>
    %21 = arith.addf %19, %20 : vector<8x128xf32>
    %cst_10 = arith.constant 0.999899983 : f32
    %22 = vector.broadcast %cst_10 : f32 to vector<8x128xf32>
    %23 = arith.mulf %22, %1 : vector<8x128xf32>
    %cst_11 = arith.constant 5.000000e-05 : f32
    %24 = vector.broadcast %cst_11 : f32 to vector<8x128xf32>
    %25 = arith.addf %23, %24 : vector<8x128xf32>
    %cst_12 = arith.constant 1.000000e-30 : f32
    %26 = vector.broadcast %cst_12 : f32 to vector<8x128xf32>
    %27 = arith.maximumf %21, %26 : vector<8x128xf32>
    %28 = math.log %27 : vector<8x128xf32>
    %29 = arith.mulf %21, %28 : vector<8x128xf32>
    %cst_13 = arith.constant 1.000000e-30 : f32
    %30 = vector.broadcast %cst_13 : f32 to vector<8x128xf32>
    %31 = arith.maximumf %25, %30 : vector<8x128xf32>
    %32 = math.log %31 : vector<8x128xf32>
    %33 = arith.mulf %25, %32 : vector<8x128xf32>
    %34 = arith.addf %29, %33 : vector<8x128xf32>
    %35 = arith.mulf %25, %3 : vector<8x128xf32>
    %36 = arith.subf %13, %35 : vector<8x128xf32>
    %37 = arith.addf %36, %34 : vector<8x128xf32>
    %cst_14 = arith.constant 0.000000e+00 : f32
    %38 = vector.broadcast %cst_14 : f32 to vector<8x128xf32>
    %39 = arith.select %17, %37, %38 : vector<8x128xi1>, vector<8x128xf32>
    %40 = arith.extui %17 : vector<8x128xi1> to vector<8x128xi32>
    %41 = arith.sitofp %40 : vector<8x128xi32> to vector<8x128xf32>
    %cst_15 = arith.constant dense<0.000000e+00> : vector<128xf32>
    %42 = vector.multi_reduction <add>, %39, %cst_15 [0] : vector<8x128xf32> to vector<128xf32>
    %43 = vector.shape_cast %42 : vector<128xf32> to vector<1x128xf32>
    %cst_16 = arith.constant dense<0.000000e+00> : vector<128xf32>
    %44 = vector.multi_reduction <add>, %41, %cst_16 [0] : vector<8x128xf32> to vector<128xf32>
    %45 = vector.shape_cast %44 : vector<128xf32> to vector<1x128xf32>
    %46 = tpu.concatenate %43, %45 in 0 : vector<1x128xf32>, vector<1x128xf32> -> vector<2x128xf32>
    %47 = vector.shape_cast %46 : vector<2x128xf32> to vector<1x2x128xf32>
    %c0_17 = arith.constant 0 : index
    %c0_18 = arith.constant 0 : index
    %c0_19 = arith.constant 0 : index
    %48 = vector.load %arg3[%c0_17, %c0_18, %c0_19] : memref<1x2x128xf32, #tpu.memory_space<vmem>>, vector<1x2x128xf32>
    tpu.vector_store %arg3[%c0_17, %c0_18, %c0_19], %47 {strides = array<i32>} : memref<1x2x128xf32, #tpu.memory_space<vmem>>, vector<1x2x128xf32>,
    return
  }
  func.func @transform_0(%arg0: i32) -> (i32, i32) {
    %c0_i32 = arith.constant 0 : i32
    %c0_i32_0 = arith.constant 0 : i32
    return %arg0, %c0_i32 : i32, i32
  }
  func.func @transform_1(%arg0: i32) -> (i32, i32) {
    %c0_i32 = arith.constant 0 : i32
    %c0_i32_0 = arith.constant 0 : i32
    return %arg0, %c0_i32 : i32, i32
  }
  func.func @transform_2(%arg0: i32) -> (i32, i32, i32) {
    %c0_i32 = arith.constant 0 : i32
    %c0_i32_0 = arith.constant 0 : i32
    %c0_i32_1 = arith.constant 0 : i32
    return %arg0, %c0_i32, %c0_i32_0 : i32, i32, i32
  }
}

</mosaic_0001>

<llo_original>
// kernel: tpu_custom_call.1
$region0: #{tpu_custom_call.1}
  #allocation0 [shape = 'u32[]', space=smem, size = 0x4, offset = 0x4, fixed_abs, tag = 'smem constant byte address 0x4 - core index']
  #allocation1 [shape = 'u32[144,128]{1,0:T(1,128)}', space=vmem, size = 0x12000, scoped, tag = 'internal scratch']
  %s0 = inlined_call_operand.hbm [shape: f32[8,128], index: 0, kind: input, shape index: {}]
  %s1 = inlined_call_operand.hbm [shape: f32[8,128], index: 1, kind: input, shape index: {}]
  %s2 = inlined_call_operand.hbm [shape: f32[1,2,128], index: 2, kind: output, shape index: {}]
  %s3 = sld [smem:[#allocation0]]
  $region26: #{tpu_custom_call.1} parent=0
    _
  %s5 = ssub.s32 1, %s3
  %s6 = scalar_select 0, %s5, %s3
  $region1: #{tpu_custom_call.1} parent=0
    #allocation2 [shape = 'u8[4096]{0}', space=vmem, size = 0x1000, scoped, tag = 'input window, operand 0, single buffered']
    #allocation3 [shape = 's32[1]{0}', space=sflag, size = 0x4, scoped, tag = 'scoped memory for tpu_custom_call.1']
    #allocation4 [shape = 's32[1]{0}', space=sflag, size = 0x4, scoped, tag = 'scoped memory for tpu_custom_call.1']
    #allocation5 [shape = 'u8[4096]{0}', space=vmem, size = 0x1000, scoped, tag = 'input window, operand 1, single buffered']
    #allocation6 [shape = 's32[1]{0}', space=sflag, size = 0x4, scoped, tag = 'scoped memory for tpu_custom_call.1']
    #allocation7 [shape = 'u8[1024]{0}', space=vmem, size = 0x400, scoped, tag = 'output window, operand 0, single buffered']
    %7 = vsyncpa [#allocation3], 0
    %8 = vsyncpa [#allocation6], 0
    %9 = vsyncpa [#allocation4], 0
    // Predicated region
    $region2: #{tpu_custom_call.1} parent=1 // pred_check
      _
    $region3: #{tpu_custom_call.1} parent=1 // pred_check_branch
      %11 = sbr.rel (0) target = $region5
    $region4: #{tpu_custom_call.1} parent=1 // pred_region
      %s13 = ssub.s32 128, 128
      %14 = vsyncadd [#allocation3], %s13
      %s16 = sshll.u32 [#allocation2], 4
      %s17 = int_to_ptr.vmem [resolvable:$true] %s16
      %19 = dma.hbm_to_vmem [thread:$0]  %s0, 128, %s17, [#allocation3]
    $region5: #{tpu_custom_call.1} parent=1 // pred_fallthru
      _
    // Predicated region
    $region6: #{tpu_custom_call.1} parent=1 // pred_check
      _
    $region7: #{tpu_custom_call.1} parent=1 // pred_check_branch
      %21 = sbr.rel (0) target = $region9
    $region8: #{tpu_custom_call.1} parent=1 // pred_region
      %s23 = ssub.s32 128, 128
      %24 = vsyncadd [#allocation6], %s23
      %s26 = sshll.u32 [#allocation5], 4
      %s27 = int_to_ptr.vmem [resolvable:$true] %s26
      %29 = dma.hbm_to_vmem [thread:$0]  %s1, 128, %s27, [#allocation6]
    $region9: #{tpu_custom_call.1} parent=1 // pred_fallthru
      _
    // Predicated region
    $region10: #{tpu_custom_call.1} parent=1 // pred_check
      _
    $region11: #{tpu_custom_call.1} parent=1 // pred_check_branch
      %31 = sbr.rel (0) target = $region13
    $region12: #{tpu_custom_call.1} parent=1 // pred_region
      %32 = dma.done [#allocation3], 128
    $region13: #{tpu_custom_call.1} parent=1 // pred_fallthru
      _
    // Predicated region
    $region14: #{tpu_custom_call.1} parent=1 // pred_check
      _
    $region15: #{tpu_custom_call.1} parent=1 // pred_check_branch
      %34 = sbr.rel (0) target = $region17
    $region16: #{tpu_custom_call.1} parent=1 // pred_region
      %35 = dma.done [#allocation6], 128
    $region17: #{tpu_custom_call.1} parent=1 // pred_fallthru
      _
    %v36 = vld [vmem:[#allocation2] sm:$0xff]
    %v37 = vld [vmem:[#allocation5] sm:$0xff]
    %v38 = vmax.f32 %v36, 0.0
    %v39 = vand.u32 2147483647, %v36
    %v40 = vsub.f32 0.0, %v39
    %v41 = vmul.f32 %v40, 1.442695
    %v42 = vpow.pop %v41
    %v43 = vadd.f32 %v42, 1.0
    %v44 = vlog2.pop %v43
    %v45 = vmul.f32 %v44, 0.6931472
    %v46 = vadd.f32 %v38, %v45
    %v47 = vsub.f32 1.0, %v37
    %vm48 = vcmp.ne.f32.partialorder %v47, -1.0
    %v49 = vmul.f32 %v47, 0.9999
    %v50 = vadd.f32 %v49, 5e-05
    %v51 = vmul.f32 %v37, 0.9999
    %v52 = vadd.f32 %v51, 5e-05
    %v53 = vmax.f32 %v50, 1e-30
    %v54 = vlog2.pop %v53
    %v55 = vmul.f32 %v54, 0.6931472
    %v56 = vmul.f32 %v50, %v55
    %v57 = vmax.f32 %v52, 1e-30
    %v58 = vlog2.pop %v57
    %v59 = vmul.f32 %v58, 0.6931472
    %v60 = vmul.f32 %v52, %v59
    %v61 = vadd.f32 %v56, %v60
    %v62 = vmul.f32 %v52, %v36
    %v63 = vsub.f32 %v46, %v62
    %v64 = vadd.f32 %v63, %v61
    %v65 = vsel %vm48, %v64, 0.0
    %v66 = vsel %vm48, 1, 0
    %v67 = vcvt.s32.f32 %v66
    %v68 = vrot.slane %v65, 4
    %v69 = vadd.f32 %v65, %v68
    %v70 = vrot.slane %v69, 2
    %v71 = vadd.f32 %v69, %v70
    %v72 = vrot.slane %v71, 1
    %v73 = vadd.f32 %v71, %v72
    %v74 = vrot.slane %v67, 4
    %v75 = vadd.f32 %v67, %v74
    %v76 = vrot.slane %v75, 2
    %v77 = vadd.f32 %v75, %v76
    %v78 = vrot.slane %v77, 1
    %v79 = vadd.f32 %v77, %v78
    %vm80 = vcmask 1040384
    %v81 = vsel %vm80, %v73, %v79
    %82 = vst [vmem:[#allocation7] sm:$0x3] %v81
    // Predicated region
    $region18: #{tpu_custom_call.1} parent=1 // pred_check
      _
    $region19: #{tpu_custom_call.1} parent=1 // pred_check_branch
      %84 = sbr.rel (0) target = $region21
    $region20: #{tpu_custom_call.1} parent=1 // pred_region
      %s86 = ssub.s32 32, 32
      %87 = vsyncadd [#allocation4], %s86
      %s89 = sshll.u32 [#allocation7], 4
      %s90 = int_to_ptr.vmem [resolvable:$true] %s89
      %92 = dma.vmem_to_hbm [thread:$0]  %s90, 32, %s2, [#allocation4]
    $region21: #{tpu_custom_call.1} parent=1 // pred_fallthru
      _
    // Predicated region
    $region22: #{tpu_custom_call.1} parent=1 // pred_check
      _
    $region23: #{tpu_custom_call.1} parent=1 // pred_check_branch
      %94 = sbr.rel (0) target = $region25
    $region24: #{tpu_custom_call.1} parent=1 // pred_region
      %95 = dma.done [#allocation4], 32
    $region25: #{tpu_custom_call.1} parent=1 // pred_fallthru
      _
    %96 = vsyncpa [#allocation3], 1
    %97 = vsyncpa [#allocation6], 1
    %98 = vsyncpa [#allocation4], 1

</llo_original>
